<compile_context>
chip_gen: v5e
topology: v5e:2x2
jax: 0.10.0
libtpu: 0.0.40
codegen_flags: <defaults>
</compile_context>

<pallas_src>
import jax
import jax.numpy as jnp
from jax.experimental import pallas as pl
from jax.experimental.pallas import tpu as pltpu


_LANE = 128
_MAX_BLOCK_B = 8192  # tile + (H, tb) f32 temp stays well under VMEM on v5e/v6e/v7x


def _round_up(x, m):
    return -(-x // m) * m


def _make_kernel(precision):
    def kernel(zt_ref, wzT_ref, beff_ref, w2T_ref, b2T_ref, o_ref):
        # hidden = tanh(Wz^T @ Z^T + bias_eff)      -> (H, tb), batch on lanes
        h = jnp.dot(wzT_ref[...], zt_ref[...],
                    preferred_element_type=jnp.float32, precision=precision)
        h = jnp.tanh(h + beff_ref[...])
        # dZ^T/dt = W2^T @ hidden + b2^T            -> (Dz, tb), lane-dense store
        out = jnp.dot(w2T_ref[...], h.astype(w2T_ref.dtype),
                      preferred_element_type=jnp.float32, precision=precision)
        o_ref[...] = (out + b2T_ref[...]).astype(o_ref.dtype)
    return kernel


def make_latent_dynamics(U, params, *, block_b=4096, param_dtype=jnp.bfloat16):
    """Build LatentDynamics.forward(t, Z) with the fixed control U folded in.

    params = (Wz, Wu, b1, W2, b2), weights laid out (in_features, out_features).
    Returns forward(t, Z) -> dZ/dt with t ignored (autonomous dynamics), matching
    the reference nn.Module semantics. forward.feature_major(t, Zt) consumes /
    produces (Dz, B) transposed state (preferred for an ODE integrator loop).
    """
    Wz, Wu, b1, W2, b2 = params
    Dz, H = Wz.shape

    # Fold the constant control input into the hidden bias ONCE (kills the
    # concat and one matmul per RHS evaluation).
    U2 = jnp.atleast_2d(jnp.asarray(U, jnp.float32))
    bias_eff = (U2 @ jnp.asarray(Wu, jnp.float32)
                + jnp.asarray(b1, jnp.float32)).reshape(H, 1)      # (H, 1) f32

    # Pre-transpose + cast weights once (feature-major kernel layout).
    p_dtype = jnp.dtype(param_dtype)
    wzT = jnp.asarray(Wz).T.astype(p_dtype)                        # (H, Dz)
    w2T = jnp.asarray(W2).T.astype(p_dtype)                        # (Dz, H)
    b2T = jnp.asarray(b2, jnp.float32).reshape(Dz, 1)              # (Dz, 1) f32

    # bf16 operands: default MXU precision. f32 operands: ask for full f32.
    precision = (jax.lax.Precision.HIGHEST
                 if p_dtype == jnp.dtype(jnp.float32) else None)
    kernel = _make_kernel(precision)

    # Sanitize user tile: lane-aligned, bounded for v7x's smaller VMEM.
    block_b_s = max(_LANE, min(_MAX_BLOCK_B, _round_up(int(block_b), _LANE)))

    def forward_t(t, Zt):
        """Feature-major RHS: Zt is (Dz, B); returns dZ^T/dt of shape (Dz, B)."""
        del t  # autonomous dynamics; matches the reference forward
        B = Zt.shape[1]
        B_pad = _round_up(B, _LANE)
        if B_pad <= block_b_s:
            # Whole batch fits one tile. If it is big enough, split in two so
            # v7x's second TensorCore gets work; otherwise one full tile.
            tb = _round_up(-(-B_pad // 2), _LANE) if B_pad >= 4 * _LANE else B_pad
        else:
            tb = block_b_s
        grid = -(-B_pad // tb)
        B_full = grid * tb                    # only the last tile carries padding

        Zt_in = Zt.astype(p_dtype)
        if B_full != B:
            Zt_in = jnp.pad(Zt_in, ((0, 0), (0, B_full - B)))

        in_itemsize = p_dtype.itemsize
        cost = pl.CostEstimate(
            flops=4 * B_full * Dz * H,
            transcendentals=B_full * H,
            bytes_accessed=int(B_full * Dz * in_itemsize      # Z^T loads
                               + B_full * Dz * 4              # dZ^T stores
                               + (wzT.size + w2T.size) * in_itemsize
                               + (bias_eff.size + b2T.size) * 4))

        out_t = pl.pallas_call(
            kernel,
            out_shape=jax.ShapeDtypeStruct((Dz, B_full), jnp.float32),
            grid=(grid,),
            in_specs=[
                pl.BlockSpec((Dz, tb), lambda i: (0, i)),   # Z^T tile (streams)
                pl.BlockSpec((H, Dz), lambda i: (0, 0)),    # Wz^T   (VMEM-resident)
                pl.BlockSpec((H, 1), lambda i: (0, 0)),     # bias_eff (resident)
                pl.BlockSpec((Dz, H), lambda i: (0, 0)),    # W2^T   (resident)
                pl.BlockSpec((Dz, 1), lambda i: (0, 0)),    # b2^T   (resident)
            ],
            out_specs=pl.BlockSpec((Dz, tb), lambda i: (0, i)),
            compiler_params=pltpu.CompilerParams(
                # Independent batch tiles: shard across v7x's 2 TensorCores.
                dimension_semantics=("parallel",)),
            cost_estimate=cost,
        )(Zt_in, wzT, bias_eff, w2T, b2T)
        return out_t[:, :B]

    def forward(t, Z):
        # Module-compatible signature: Z is (B, Dz). Transpose at the boundary;
        # integrators should prefer forward.feature_major to skip this.
        return forward_t(t, Z.T).T

    forward.feature_major = forward_t
    return forward


def reference(Z, U, params, dtype=jnp.float32):
    """Pure-JAX reference for fdyn(Z, U), with optional operand dtype."""
    Wz, Wu, b1, W2, b2 = params
    bias = jnp.atleast_2d(U).astype(jnp.float32) @ Wu.astype(jnp.float32) + b1
    h = jnp.tanh(jnp.dot(Z.astype(dtype), Wz.astype(dtype),
                         preferred_element_type=jnp.float32) + bias)
    return jnp.dot(h.astype(dtype), W2.astype(dtype),
                   preferred_element_type=jnp.float32) + b2


if __name__ == "__main__":
    # Small shapes consistent with a latent cartpole model:
    #   batch B=8, latent dim Dz=32, control dim Du=8, hidden H=128.
    B, Dz, Du, H = 8, 32, 8, 128

    key = jax.random.PRNGKey(0)
    kz, ku, k1, k2, k3, k4, k5 = jax.random.split(key, 7)

    Z = jax.random.normal(kz, (B, Dz), dtype=jnp.float32)
    U = jax.random.normal(ku, (1, Du), dtype=jnp.float32)   # fixed control input

    Wz = jax.random.normal(k1, (Dz, H), dtype=jnp.float32) * 0.1
    Wu = jax.random.normal(k2, (Du, H), dtype=jnp.float32) * 0.1
    b1 = jax.random.normal(k3, (1, H), dtype=jnp.float32) * 0.01
    W2 = jax.random.normal(k4, (H, Dz), dtype=jnp.float32) * 0.1
    b2 = jax.random.normal(k5, (1, Dz), dtype=jnp.float32) * 0.01
    params = (Wz, Wu, b1, W2, b2)

    dyn = make_latent_dynamics(U, params)
    t = jnp.float32(0.0)  # unused, matches nn.Module signature forward(t, Z)

    # Single small batch (1 lane-aligned tile).
    out = dyn(t, Z)
    jax.block_until_ready(out)
    assert out.shape == (B, Dz)
    # Tight check against a reference with matching bf16 operand rounding,
    # plus a looser sanity check against the pure-f32 reference.
    assert jnp.allclose(out, reference(Z, U, params, dtype=jnp.bfloat16),
                        atol=5e-3, rtol=5e-3)
    assert jnp.allclose(out, reference(Z, U, params, dtype=jnp.float32),
                        atol=3e-2, rtol=3e-2)

    # Batched path: grid = 2 tiles on the lane-mapped batch axis, last tile
    # partially padded (only lane-alignment / last-tile padding, never a full
    # extra grid of tiles).
    Bb = 1000
    Zb = jax.random.normal(jax.random.PRNGKey(1), (Bb, Dz), dtype=jnp.float32)
    out_b = dyn(t, Zb)
    jax.block_until_ready(out_b)
    assert out_b.shape == (Bb, Dz)
    assert jnp.allclose(out_b, reference(Zb, U, params, dtype=jnp.bfloat16),
                        atol=5e-3, rtol=5e-3)

    # Feature-major entry point (integrator keeps (Dz, B) state: no wrapper
    # transposes). Must agree exactly with the boundary-transposed path.
    out_ft = dyn.feature_major(t, Zb.T)
    jax.block_until_ready(out_ft)
    assert out_ft.shape == (Dz, Bb)
    assert jnp.allclose(out_ft.T, out_b, atol=1e-6, rtol=1e-6)

    print("KERNEL_OK")
</pallas_src>

<mosaic_0001>
module attributes {stable_mosaic.version = 11 : i64} {
  func.func @kernel(%arg0: i32, %arg1: memref<32x128xbf16, #tpu.memory_space<vmem>>, %arg2: memref<128x32xbf16, #tpu.memory_space<vmem>>, %arg3: memref<128x1xf32, #tpu.memory_space<vmem>>, %arg4: memref<32x128xbf16, #tpu.memory_space<vmem>>, %arg5: memref<32x1xf32, #tpu.memory_space<vmem>>, %arg6: memref<32x128xf32, #tpu.memory_space<vmem>>) attributes {dimension_semantics = [#tpu.dimension_semantics<parallel>], iteration_bounds = array<i64: 1>, scalar_prefetch = 0 : i64, scratch_operands = 0 : i64, tpu.core_type = #tpu.core_type<tc>, window_params = [{transform_indices = @transform_0, window_bounds = array<i64: 32, 128>}, {pipeline_mode = #tpu.pipeline_mode<synchronous>, transform_indices = @transform_1, window_bounds = array<i64: 128, 32>}, {pipeline_mode = #tpu.pipeline_mode<synchronous>, transform_indices = @transform_2, window_bounds = array<i64: 128, 1>}, {pipeline_mode = #tpu.pipeline_mode<synchronous>, transform_indices = @transform_3, window_bounds = array<i64: 32, 128>}, {pipeline_mode = #tpu.pipeline_mode<synchronous>, transform_indices = @transform_4, window_bounds = array<i64: 32, 1>}, {transform_indices = @transform_5, window_bounds = array<i64: 32, 128>}]} {
    %c0 = arith.constant 0 : index
    %c0_0 = arith.constant 0 : index
    %0 = vector.load %arg2[%c0, %c0_0] : memref<128x32xbf16, #tpu.memory_space<vmem>>, vector<128x32xbf16>
    %c0_1 = arith.constant 0 : index
    %c0_2 = arith.constant 0 : index
    %1 = vector.load %arg1[%c0_1, %c0_2] : memref<32x128xbf16, #tpu.memory_space<vmem>>, vector<32x128xbf16>
    %cst = arith.constant dense<0.000000e+00> : vector<128x128xf32>
    %2 = tpu.matmul %0, %1, %cst {dimension_numbers = #tpu.dot_dimension_numbers<[1], [0], [0], [1], [0, 0, 1, 1], [], []>} : vector<128x32xbf16>, vector<32x128xbf16>, vector<128x128xf32> -> vector<128x128xf32>
    %c0_3 = arith.constant 0 : index
    %c0_4 = arith.constant 0 : index
    %3 = vector.load %arg3[%c0_3, %c0_4] : memref<128x1xf32, #tpu.memory_space<vmem>>, vector<128x1xf32>
    %4 = vector.broadcast %3 : vector<128x1xf32> to vector<128x128xf32>
    %5 = arith.addf %2, %4 : vector<128x128xf32>
    %6 = math.tanh %5 : vector<128x128xf32>
    %c0_5 = arith.constant 0 : index
    %c0_6 = arith.constant 0 : index
    %7 = vector.load %arg4[%c0_5, %c0_6] : memref<32x128xbf16, #tpu.memory_space<vmem>>, vector<32x128xbf16>
    %8 = arith.truncf %6 : vector<128x128xf32> to vector<128x128xbf16>
    %cst_7 = arith.constant dense<0.000000e+00> : vector<32x128xf32>
    %9 = tpu.matmul %7, %8, %cst_7 {dimension_numbers = #tpu.dot_dimension_numbers<[1], [0], [0], [1], [0, 0, 1, 1], [], []>} : vector<32x128xbf16>, vector<128x128xbf16>, vector<32x128xf32> -> vector<32x128xf32>
    %c0_8 = arith.constant 0 : index
    %c0_9 = arith.constant 0 : index
    %10 = vector.load %arg5[%c0_8, %c0_9] : memref<32x1xf32, #tpu.memory_space<vmem>>, vector<32x1xf32>
    %11 = vector.broadcast %10 : vector<32x1xf32> to vector<32x128xf32>
    %12 = arith.addf %9, %11 : vector<32x128xf32>
    %c0_10 = arith.constant 0 : index
    %c0_11 = arith.constant 0 : index
    %13 = vector.load %arg6[%c0_10, %c0_11] : memref<32x128xf32, #tpu.memory_space<vmem>>, vector<32x128xf32>
    tpu.vector_store %arg6[%c0_10, %c0_11], %12 {strides = array<i32>} : memref<32x128xf32, #tpu.memory_space<vmem>>, vector<32x128xf32>,
    return
  }
  func.func @transform_0(%arg0: i32) -> (i32, i32) {
    %c0_i32 = arith.constant 0 : i32
    %c0_i32_0 = arith.constant 0 : i32
    return %c0_i32, %arg0 : i32, i32
  }
  func.func @transform_1(%arg0: i32) -> (i32, i32) {
    %c0_i32 = arith.constant 0 : i32
    %c0_i32_0 = arith.constant 0 : i32
    %c0_i32_1 = arith.constant 0 : i32
    return %c0_i32, %c0_i32_0 : i32, i32
  }
  func.func @transform_2(%arg0: i32) -> (i32, i32) {
    %c0_i32 = arith.constant 0 : i32
    %c0_i32_0 = arith.constant 0 : i32
    %c0_i32_1 = arith.constant 0 : i32
    return %c0_i32, %c0_i32_0 : i32, i32
  }
  func.func @transform_3(%arg0: i32) -> (i32, i32) {
    %c0_i32 = arith.constant 0 : i32
    %c0_i32_0 = arith.constant 0 : i32
    %c0_i32_1 = arith.constant 0 : i32
    return %c0_i32, %c0_i32_0 : i32, i32
  }
  func.func @transform_4(%arg0: i32) -> (i32, i32) {
    %c0_i32 = arith.constant 0 : i32
    %c0_i32_0 = arith.constant 0 : i32
    %c0_i32_1 = arith.constant 0 : i32
    return %c0_i32, %c0_i32_0 : i32, i32
  }
  func.func @transform_5(%arg0: i32) -> (i32, i32) {
    %c0_i32 = arith.constant 0 : i32
    %c0_i32_0 = arith.constant 0 : i32
    return %c0_i32, %arg0 : i32, i32
  }
}

</mosaic_0001>

<llo_original>
// kernel: tpu_custom_call.1
$region0: #{tpu_custom_call.1}
  #allocation0 [shape = 'u32[]', space=smem, size = 0x4, offset = 0x4, fixed_abs, tag = 'smem constant byte address 0x4 - core index']
  #allocation1 [shape = 'u32[72,128]{1,0:T(1,128)}', space=vmem, size = 0x9000, scoped, tag = 'internal scratch']
  %s0 = inlined_call_operand.vmem [shape: bf16[32,128], index: 0, kind: input, shape index: {}]
  %s1 = inlined_call_operand.vmem [shape: bf16[128,32], index: 1, kind: input, shape index: {}]
  %s2 = inlined_call_operand.vmem [shape: f32[128,1], index: 2, kind: input, shape index: {}]
  %s3 = inlined_call_operand.vmem [shape: bf16[32,128], index: 3, kind: input, shape index: {}]
  %s4 = inlined_call_operand.vmem [shape: f32[32,1], index: 4, kind: input, shape index: {}]
  %s5 = inlined_call_operand.hbm [shape: f32[32,128], index: 5, kind: output, shape index: {}]
  %s6 = sld [smem:[#allocation0]]
  $region30: #{tpu_custom_call.1} parent=0
    _
  %s8 = ssub.s32 1, %s6
  %s9 = scalar_select 0, %s8, %s6
  $region1: #{tpu_custom_call.1} parent=0
    #allocation2 [shape = 'u8[16384]{0}', space=vmem, size = 0x4000, scoped, tag = 'output window, operand 0, single buffered']
    #allocation3 [shape = 's32[1]{0}', space=sflag, size = 0x4, scoped, tag = 'scoped memory for tpu_custom_call.1']
    %10 = vsyncpa [#allocation3], 0
    // Predicated region
    $region2: #{tpu_custom_call.1} parent=1 // pred_check
      _
    $region3: #{tpu_custom_call.1} parent=1 // pred_check_branch
      %12 = sbr.rel (0) target = $region5
    $region4: #{tpu_custom_call.1} parent=1 // pred_region
      _
    $region5: #{tpu_custom_call.1} parent=1 // pred_fallthru
      _
    // Predicated region
    $region6: #{tpu_custom_call.1} parent=1 // pred_check
      _
    $region7: #{tpu_custom_call.1} parent=1 // pred_check_branch
      %14 = sbr.rel (0) target = $region9
    $region8: #{tpu_custom_call.1} parent=1 // pred_region
      _
    $region9: #{tpu_custom_call.1} parent=1 // pred_fallthru
      _
    // Predicated region
    $region10: #{tpu_custom_call.1} parent=1 // pred_check
      _
    $region11: #{tpu_custom_call.1} parent=1 // pred_check_branch
      %16 = sbr.rel (0) target = $region13
    $region12: #{tpu_custom_call.1} parent=1 // pred_region
      _
    $region13: #{tpu_custom_call.1} parent=1 // pred_fallthru
      _
    // Predicated region
    $region14: #{tpu_custom_call.1} parent=1 // pred_check
      _
    $region15: #{tpu_custom_call.1} parent=1 // pred_check_branch
      %18 = sbr.rel (0) target = $region17
    $region16: #{tpu_custom_call.1} parent=1 // pred_region
      _
    $region17: #{tpu_custom_call.1} parent=1 // pred_fallthru
      _
    // Predicated region
    $region18: #{tpu_custom_call.1} parent=1 // pred_check
      _
    $region19: #{tpu_custom_call.1} parent=1 // pred_check_branch
      %20 = sbr.rel (0) target = $region21
    $region20: #{tpu_custom_call.1} parent=1 // pred_region
      _
    $region21: #{tpu_custom_call.1} parent=1 // pred_fallthru
      _
    %v22 = vld [vmem:[%s1] sm:$0xf]
    %v23 = vld [vmem:[%s1 + $0x4] sm:$0xf]
    %v24 = vld [vmem:[%s1 + $0x8] sm:$0xf]
    %v25 = vld [vmem:[%s1 + $0xc] sm:$0xf]
    %v26 = vld [vmem:[%s1 + $0x10] sm:$0xf]
    %v27 = vld [vmem:[%s1 + $0x14] sm:$0xf]
    %v28 = vld [vmem:[%s1 + $0x18] sm:$0xf]
    %v29 = vld [vmem:[%s1 + $0x1c] sm:$0xf]
    %v30 = vld [vmem:[%s1 + $0x20] sm:$0xf]
    %v31 = vld [vmem:[%s1 + $0x24] sm:$0xf]
    %v32 = vld [vmem:[%s1 + $0x28] sm:$0xf]
    %v33 = vld [vmem:[%s1 + $0x2c] sm:$0xf]
    %v34 = vld [vmem:[%s1 + $0x30] sm:$0xf]
    %v35 = vld [vmem:[%s1 + $0x34] sm:$0xf]
    %v36 = vld [vmem:[%s1 + $0x38] sm:$0xf]
    %v37 = vld [vmem:[%s1 + $0x3c] sm:$0xf]
    %v38 = vld [vmem:[%s0] sm:$0xf]
    %v39 = vld [vmem:[%s0 + $0x4] sm:$0xf]
    %v40 = vld [vmem:[%s0 + $0x8] sm:$0xf]
    %v41 = vld [vmem:[%s0 + $0xc] sm:$0xf]
    %v42 = vld [vmem:[%s2] sm:$0xff]
    %v43 = vld [vmem:[%s2 + $0x8] sm:$0xff]
    %v44 = vld [vmem:[%s2 + $0x10] sm:$0xff]
    %v45 = vld [vmem:[%s2 + $0x18] sm:$0xff]
    %v46 = vld [vmem:[%s2 + $0x20] sm:$0xff]
    %v47 = vld [vmem:[%s2 + $0x28] sm:$0xff]
    %v48 = vld [vmem:[%s2 + $0x30] sm:$0xff]
    %v49 = vld [vmem:[%s2 + $0x38] sm:$0xff]
    %v50 = vld [vmem:[%s2 + $0x40] sm:$0xff]
    %v51 = vld [vmem:[%s2 + $0x48] sm:$0xff]
    %v52 = vld [vmem:[%s2 + $0x50] sm:$0xff]
    %v53 = vld [vmem:[%s2 + $0x58] sm:$0xff]
    %v54 = vld [vmem:[%s2 + $0x60] sm:$0xff]
    %v55 = vld [vmem:[%s2 + $0x68] sm:$0xff]
    %v56 = vld [vmem:[%s2 + $0x70] sm:$0xff]
    %v57 = vld [vmem:[%s2 + $0x78] sm:$0xff]
    %59 = vset.pattern.permute.xlu0 0
    %60 = vperm.xlu0 %59, %v42
    %v61 = vpop.permute.xlu0 %60
    %64 = vset.pattern.permute.xlu0 0
    %65 = vperm.xlu0 %64, %v43
    %v66 = vpop.permute.xlu0 %65
    %69 = vset.pattern.permute.xlu0 0
    %70 = vperm.xlu0 %69, %v44
    %v71 = vpop.permute.xlu0 %70
    %74 = vset.pattern.permute.xlu0 0
    %75 = vperm.xlu0 %74, %v45
    %v76 = vpop.permute.xlu0 %75
    %79 = vset.pattern.permute.xlu0 0
    %80 = vperm.xlu0 %79, %v46
    %v81 = vpop.permute.xlu0 %80
    %84 = vset.pattern.permute.xlu0 0
    %85 = vperm.xlu0 %84, %v47
    %v86 = vpop.permute.xlu0 %85
    %89 = vset.pattern.permute.xlu0 0
    %90 = vperm.xlu0 %89, %v48
    %v91 = vpop.permute.xlu0 %90
    %94 = vset.pattern.permute.xlu0 0
    %95 = vperm.xlu0 %94, %v49
    %v96 = vpop.permute.xlu0 %95
    %99 = vset.pattern.permute.xlu0 0
    %100 = vperm.xlu0 %99, %v50
    %v101 = vpop.permute.xlu0 %100
    %104 = vset.pattern.permute.xlu0 0
    %105 = vperm.xlu0 %104, %v51
    %v106 = vpop.permute.xlu0 %105
    %109 = vset.pattern.permute.xlu0 0
    %110 = vperm.xlu0 %109, %v52
    %v111 = vpop.permute.xlu0 %110
    %114 = vset.pattern.permute.xlu0 0
    %115 = vperm.xlu0 %114, %v53
    %v116 = vpop.permute.xlu0 %115
    %119 = vset.pattern.permute.xlu0 0
    %120 = vperm.xlu0 %119, %v54
    %v121 = vpop.permute.xlu0 %120
    %124 = vset.pattern.permute.xlu0 0
    %125 = vperm.xlu0 %124, %v55
    %v126 = vpop.permute.xlu0 %125
    %129 = vset.pattern.permute.xlu0 0
    %130 = vperm.xlu0 %129, %v56
    %v131 = vpop.permute.xlu0 %130
    %134 = vset.pattern.permute.xlu0 0
    %135 = vperm.xlu0 %134, %v57
    %v136 = vpop.permute.xlu0 %135
    %v154 = vunpack.c.l.b16 %v22
    %v155 = vunpack.c.l.b16 %v23
    %v156 = vunpack.c.l.b16 %v24
    %v157 = vunpack.c.l.b16 %v25
    %v158 = vunpack.c.l.b16 %v26
    %v159 = vunpack.c.l.b16 %v27
    %v160 = vunpack.c.l.b16 %v28
    %v161 = vunpack.c.l.b16 %v29
    %v162 = vunpack.c.l.b16 %v30
    %v163 = vunpack.c.l.b16 %v31
    %v164 = vunpack.c.l.b16 %v32
    %v165 = vunpack.c.l.b16 %v33
    %v166 = vunpack.c.l.b16 %v34
    %v167 = vunpack.c.l.b16 %v35
    %v168 = vunpack.c.l.b16 %v36
    %v169 = vunpack.c.l.b16 %v37
    %v170 = vpack.c.b16 %v155, %v154
    %v171 = vpack.c.b16 %v157, %v156
    %v172 = vpack.c.b16 %v159, %v158
    %v173 = vpack.c.b16 %v161, %v160
    %v174 = vpack.c.b16 %v163, %v162
    %v175 = vpack.c.b16 %v165, %v164
    %v176 = vpack.c.b16 %v167, %v166
    %v177 = vpack.c.b16 %v169, %v168
    %v182 = vunpack.c.l.b16 %v38
    %v183 = vunpack.c.l.b16 %v39
    %v184 = vunpack.c.l.b16 %v40
    %v185 = vunpack.c.l.b16 %v41
    %v186 = vpack.c.b16 %v183, %v182
    %v187 = vpack.c.b16 %v185, %v184
    %vm190 = vcmask 261120
    %v192 = vsel %vm190, %v170, 0
    %v195 = vsel %vm190, %v171, 0
    %v198 = vsel %vm190, %v172, 0
    %v201 = vsel %vm190, %v173, 0
    %v204 = vsel %vm190, %v174, 0
    %v207 = vsel %vm190, %v175, 0
    %v210 = vsel %vm190, %v176, 0
    %v213 = vsel %vm190, %v177, 0
    %215 = vmatpush.bf16.msra.mxu0 0
    %216 = vmatpush.bf16.msra.mxu0 0
    %217 = vmatpush.bf16.msra.mxu0 0
    %218 = vmatpush.bf16.msra.mxu0 0
    %219 = vmatpush.bf16.msra.mxu0 0
    %220 = vmatpush.bf16.msra.mxu0 0
    %221 = vmatpush.bf16.msra.mxu0 %v187
    %222 = vmatpush.bf16.msra.mxu0 %v186
    %223 = vmatmul.bf16.gmra.mxu0 %v192
    %v224 = vpop.f32.mrf.mxu0
    %v225 = vadd.f32 %v61, %v224
    %v226 = vpop.f32.mrf.mxu0
    %v227 = vadd.f32 %v66, %v226
    %228 = vmatmul.bf16.gmra.mxu0 %v195
    %v229 = vpop.f32.mrf.mxu0
    %v230 = vadd.f32 %v71, %v229
    %v231 = vpop.f32.mrf.mxu0
    %v232 = vadd.f32 %v76, %v231
    %233 = vmatmul.bf16.gmra.mxu0 %v198
    %v234 = vpop.f32.mrf.mxu0
    %v235 = vadd.f32 %v81, %v234
    %v236 = vpop.f32.mrf.mxu0
    %v237 = vadd.f32 %v86, %v236
    %238 = vmatmul.bf16.gmra.mxu0 %v201
    %v239 = vpop.f32.mrf.mxu0
    %v240 = vadd.f32 %v91, %v239
    %v241 = vpop.f32.mrf.mxu0
    %v242 = vadd.f32 %v96, %v241
    %243 = vmatmul.bf16.gmra.mxu0 %v204
    %v244 = vpop.f32.mrf.mxu0
    %v245 = vadd.f32 %v101, %v244
    %v246 = vpop.f32.mrf.mxu0
    %v247 = vadd.f32 %v106, %v246
    %248 = vmatmul.bf16.gmra.mxu0 %v207
    %v249 = vpop.f32.mrf.mxu0
    %v250 = vadd.f32 %v111, %v249
    %v251 = vpop.f32.mrf.mxu0
    %v252 = vadd.f32 %v116, %v251
    %253 = vmatmul.bf16.gmra.mxu0 %v210
    %v254 = vpop.f32.mrf.mxu0
    %v255 = vadd.f32 %v121, %v254
    %v256 = vpop.f32.mrf.mxu0
    %v257 = vadd.f32 %v126, %v256
    %258 = vmatmul.bf16.gmra.mxu0 %v213
    %v259 = vpop.f32.mrf.mxu0
    %v260 = vadd.f32 %v131, %v259
    %v261 = vpop.f32.mrf.mxu0
    %v262 = vadd.f32 %v136, %v261
    %263 = vdwg.mxu0
    %v264 = vtanh.pop %v225
    %v265 = vtanh.pop %v227
    %v266 = vtanh.pop %v230
    %v267 = vtanh.pop %v232
    %v268 = vtanh.pop %v235
    %v269 = vtanh.pop %v237
    %v270 = vtanh.pop %v240
    %v271 = vtanh.pop %v242
    %v272 = vtanh.pop %v245
    %v273 = vtanh.pop %v247
    %v274 = vtanh.pop %v250
    %v275 = vtanh.pop %v252
    %v276 = vtanh.pop %v255
    %v277 = vtanh.pop %v257
    %v278 = vtanh.pop %v260
    %v279 = vtanh.pop %v262
    %v280 = vld [vmem:[%s3] sm:$0xf]
    %v281 = vld [vmem:[%s3 + $0x4] sm:$0xf]
    %v282 = vld [vmem:[%s3 + $0x8] sm:$0xf]
    %v283 = vld [vmem:[%s3 + $0xc] sm:$0xf]
    %v284 = vpack.c.bf16 %v265, %v264
    %v285 = vpack.c.bf16 %v267, %v266
    %v286 = vpack.c.bf16 %v269, %v268
    %v287 = vpack.c.bf16 %v271, %v270
    %v288 = vpack.c.bf16 %v273, %v272
    %v289 = vpack.c.bf16 %v275, %v274
    %v290 = vpack.c.bf16 %v277, %v276
    %v291 = vpack.c.bf16 %v279, %v278
    %v292 = vld [vmem:[%s4] sm:$0xff]
    %v293 = vld [vmem:[%s4 + $0x8] sm:$0xff]
    %v294 = vld [vmem:[%s4 + $0x10] sm:$0xff]
    %v295 = vld [vmem:[%s4 + $0x18] sm:$0xff]
    %297 = vset.pattern.permute.xlu0 0
    %298 = vperm.xlu0 %297, %v292
    %v299 = vpop.permute.xlu0 %298
    %302 = vset.pattern.permute.xlu0 0
    %303 = vperm.xlu0 %302, %v293
    %v304 = vpop.permute.xlu0 %303
    %307 = vset.pattern.permute.xlu0 0
    %308 = vperm.xlu0 %307, %v294
    %v309 = vpop.permute.xlu0 %308
    %312 = vset.pattern.permute.xlu0 0
    %313 = vperm.xlu0 %312, %v295
    %v314 = vpop.permute.xlu0 %313
    %v320 = vunpack.c.l.b16 %v280
    %v321 = vunpack.c.l.b16 %v281
    %v322 = vunpack.c.l.b16 %v282
    %v323 = vunpack.c.l.b16 %v283
    %v324 = vpack.c.b16 %v321, %v320
    %v325 = vpack.c.b16 %v323, %v322
    %328 = vmatpush.bf16.msra.mxu0 %v291
    %329 = vmatpush.bf16.msra.mxu0 %v290
    %330 = vmatpush.bf16.msra.mxu0 %v289
    %331 = vmatpush.bf16.msra.mxu0 %v288
    %332 = vmatpush.bf16.msra.mxu0 %v287
    %333 = vmatpush.bf16.msra.mxu0 %v286
    %334 = vmatpush.bf16.msra.mxu0 %v285
    %335 = vmatpush.bf16.msra.mxu0 %v284
    %336 = vmatmul.bf16.gmra.mxu0 %v324
    %v337 = vpop.f32.mrf.mxu0
    %v338 = vadd.f32 %v299, %v337
    %v339 = vpop.f32.mrf.mxu0
    %v340 = vadd.f32 %v304, %v339
    %341 = vmatmul.bf16.gmra.mxu0 %v325
    %v342 = vpop.f32.mrf.mxu0
    %v343 = vadd.f32 %v309, %v342
    %v344 = vpop.f32.mrf.mxu0
    %v345 = vadd.f32 %v314, %v344
    %346 = vdwg.mxu0
    %347 = vst [vmem:[#allocation2] sm:$0xff] %v338
    %348 = vst [vmem:[#allocation2 + $0x8] sm:$0xff] %v340
    %349 = vst [vmem:[#allocation2 + $0x10] sm:$0xff] %v343
    %350 = vst [vmem:[#allocation2 + $0x18] sm:$0xff] %v345
    // Predicated region
    $region22: #{tpu_custom_call.1} parent=1 // pred_check
      _
    $region23: #{tpu_custom_call.1} parent=1 // pred_check_branch
      %352 = sbr.rel (0) target = $region25
    $region24: #{tpu_custom_call.1} parent=1 // pred_region
      %354 = vsyncadd [#allocation3], 0
      %s355 = sshll.u32 [#allocation2], 4
      %s356 = int_to_ptr.vmem [resolvable:$true] %s355
      %s357 = sshll.u32 %s5, 4
      %s358 = int_to_ptr.hbm [resolvable:$true] %s357
      %363 = dma.vmem_to_hbm [thread:$0]  %s356, 512, %s358, [#allocation3], 128, 128, 8
    $region25: #{tpu_custom_call.1} parent=1 // pred_fallthru
      _
    // Predicated region
    $region26: #{tpu_custom_call.1} parent=1 // pred_check
      _
    $region27: #{tpu_custom_call.1} parent=1 // pred_check_branch
      %365 = sbr.rel (0) target = $region29
    $region28: #{tpu_custom_call.1} parent=1 // pred_region
      %367 = dma.done [#allocation3], 512
    $region29: #{tpu_custom_call.1} parent=1 // pred_fallthru
      _
    %368 = vsyncpa [#allocation3], 1

</llo_original>
